<compile_context>
chip_gen: v7x
topology: tpu7x:2x2x1
jax: 0.10.0
libtpu: 0.0.40
codegen_flags: <defaults>
</compile_context>

<pallas_src>
import functools

import jax
import jax.numpy as jnp
from jax import lax
from jax.experimental import pallas as pl
from jax.experimental.pallas import tpu as pltpu


def _layernorm_kernel(x_ref, w_ref, b_ref, o_ref, *, eps):
    # x_ref: (Nb, C, T) tile — channels on sublanes, spatial positions on lanes.
    # w_ref / b_ref: (C, 1) per-channel params, broadcast across batch and lanes.
    x = x_ref[...].astype(jnp.float32)                 # (Nb, C, T)
    u = jnp.mean(x, axis=1, keepdims=True)             # (Nb, 1, T) mean over channels
    d = x - u
    s = jnp.mean(d * d, axis=1, keepdims=True)         # biased variance
    y = d * lax.rsqrt(s + eps)                         # EUP rsqrt
    w = w_ref[...][None]                               # (1, C, 1)
    b = b_ref[...][None]
    o_ref[...] = (w * y + b).astype(o_ref.dtype)


def _chip_config():
    """Generation-aware caps; conservative (v7x-safe) fallback if query fails."""
    cfg = dict(max_tile_bytes=4 << 20, vmem_limit_bytes=32 << 20, megacore=True)
    try:
        vmem_cap = pltpu.get_tpu_info().vmem_capacity_bytes
        if vmem_cap >= 100 * 1024 * 1024:
            # v5e / v6e: 128 MiB VMEM, single TensorCore per chip.
            cfg = dict(max_tile_bytes=8 << 20, vmem_limit_bytes=64 << 20,
                       megacore=False)
        else:
            # v7x-class: 64 MiB VMEM per TC, 2 TensorCores per chip.
            cfg = dict(max_tile_bytes=4 << 20, vmem_limit_bytes=48 << 20,
                       megacore=True)
    except Exception:  # unknown / unqueryable chip: keep safe defaults
        pass
    return cfg


def _select_tiling(n, c, hw, itemsize, max_tile_bytes, megacore):
    """Pick block dims (nb, tile_hw) for x3 of shape (n, c, hw)."""
    bytes_per_col = c * itemsize                      # one spatial column across channels
    max_lanes = max(128, (max_tile_bytes // bytes_per_col) // 128 * 128)

    if hw > max_lanes:
        # Large spatial extent: one image per block, tile the lane (spatial) axis.
        nb, tile_hw = 1, max_lanes
    else:
        # Small/moderate spatial extent: take the full spatial extent and batch
        # several images per block so each DMA stays ~max_tile_bytes long.
        tile_hw = hw
        img_bytes = c * hw * itemsize
        nb = max(1, min(n, max_tile_bytes // img_bytes))

    # Dual-TC chips: keep >=2 grid steps so both TensorCores get work.
    total = pl.cdiv(n, nb) * pl.cdiv(hw, tile_hw)
    if megacore and total < 2:
        if nb >= 2:
            nb = pl.cdiv(nb, 2)                        # split along batch (no ragged lanes)
        elif tile_hw > 128:
            tile_hw = pl.cdiv(pl.cdiv(tile_hw, 2), 128) * 128   # round_up(hw/2, 128)
    return nb, tile_hw


def _layernorm_xla(x, weight, bias, eps=1e-6):
    u = jnp.mean(x, axis=1, keepdims=True)
    s = jnp.mean((x - u) ** 2, axis=1, keepdims=True)
    xn = (x - u) / jnp.sqrt(s + eps)
    return weight[None, :, None, None] * xn + bias[None, :, None, None]


def layernorm_nchw(x, weight, bias, eps=1e-6, *, max_tile_bytes=None):
    """Channel-wise LayerNorm matching the PyTorch module; x is NCHW."""
    n, c, h, w = x.shape
    assert weight.shape == (c,) and bias.shape == (c,)
    hw = h * w

    # Tiny spatial extents (< one lane row) would force lane-sparse masked stores;
    # plain XLA handles those better than any no-transpose kernel layout.
    if hw < 128:
        return _layernorm_xla(x, weight, bias, eps)

    cfg = _chip_config()
    tile_cap = max_tile_bytes if max_tile_bytes is not None else cfg["max_tile_bytes"]

    x3 = x.reshape(n, c, hw)                           # free reshape (no transpose)
    itemsize = x.dtype.itemsize
    nb, tile_hw = _select_tiling(n, c, hw, itemsize, tile_cap, cfg["megacore"])

    grid = (pl.cdiv(n, nb), pl.cdiv(hw, tile_hw))
    total_steps = grid[0] * grid[1]
    tile_bytes = nb * c * tile_hw * itemsize

    # Many short DMAs -> deepen input pipelining; default double-buffering otherwise.
    x_spec = pl.BlockSpec((nb, c, tile_hw), lambda i, j: (i, 0, j))
    if tile_bytes < (2 << 20) and total_steps >= 4:
        try:
            x_spec = pl.BlockSpec((nb, c, tile_hw), lambda i, j: (i, 0, j),
                                  pipeline_mode=pl.Buffered(3))
        except TypeError:
            pass  # older jax without pipeline_mode: keep the default 2-deep pipeline

    w2 = weight.reshape(c, 1).astype(jnp.float32)
    b2 = bias.reshape(c, 1).astype(jnp.float32)

    cost = pl.CostEstimate(
        flops=8 * n * c * hw,
        transcendentals=n * hw,
        bytes_accessed=2 * n * c * hw * itemsize + (w2.size + b2.size) * 4,
    )

    out = pl.pallas_call(
        functools.partial(_layernorm_kernel, eps=eps),
        out_shape=jax.ShapeDtypeStruct((n, c, hw), x.dtype),
        grid_spec=pltpu.PrefetchScalarGridSpec(
            num_scalar_prefetch=0,
            grid=grid,
            in_specs=[
                x_spec,
                pl.BlockSpec((c, 1), lambda i, j: (0, 0)),
                pl.BlockSpec((c, 1), lambda i, j: (0, 0)),
            ],
            out_specs=pl.BlockSpec((nb, c, tile_hw), lambda i, j: (i, 0, j)),
        ),
        compiler_params=pltpu.CompilerParams(
            dimension_semantics=("parallel", "parallel"),
            vmem_limit_bytes=cfg["vmem_limit_bytes"],
        ),
        cost_estimate=cost,
    )(x3, w2, b2)

    return out.reshape(n, c, h, w)                     # free reshape back to NCHW


if __name__ == "__main__":
    key = jax.random.PRNGKey(0)

    def make_case(k, n, c, h, w):
        kx, kw, kb = jax.random.split(k, 3)
        x = jax.random.normal(kx, (n, c, h, w), dtype=jnp.float32)
        # Module inits weight=1, bias=0; perturb so per-channel broadcast is exercised.
        weight = jnp.ones((c,), jnp.float32) + 0.1 * jax.random.normal(kw, (c,), jnp.float32)
        bias = 0.1 * jax.random.normal(kb, (c,), jnp.float32)
        return x, weight, bias

    cases = [
        # (shape, kwargs) — kwargs force specific tiling paths at small sizes.
        ((2, 64, 16, 16), {}),                               # default path (module dim=64)
        ((1, 30, 24, 24), {}),                               # C not a multiple of sublane pack (8)
        ((3, 64, 8, 16), dict(max_tile_bytes=64 * 1024)),    # batched blocks, ragged batch edge
        ((1, 64, 32, 36), dict(max_tile_bytes=64 * 1024)),   # spatial lane tiling + Buffered(3), ragged edge
        ((2, 64, 4, 8), {}),                                 # H*W < 128 -> XLA fallback route
    ]

    keys = jax.random.split(key, len(cases))
    for (shape, kwargs), k in zip(cases, keys):
        x, weight, bias = make_case(k, *shape)
        out = jax.block_until_ready(layernorm_nchw(x, weight, bias, eps=1e-6, **kwargs))
        ref = _layernorm_xla(x, weight, bias, eps=1e-6)
        assert out.shape == x.shape
        assert jnp.allclose(out, ref, atol=1e-4, rtol=1e-4), f"mismatch vs reference for {shape}"

    print("KERNEL_OK")
</pallas_src>

<mosaic_0001>
module attributes {stable_mosaic.version = 11 : i64} {
  func.func @_layernorm_kernel(%arg0: i32, %arg1: i32, %arg2: memref<1x64x256xf32, #tpu.memory_space<vmem>>, %arg3: memref<64x1xf32, #tpu.memory_space<vmem>>, %arg4: memref<64x1xf32, #tpu.memory_space<vmem>>, %arg5: memref<1x64x256xf32, #tpu.memory_space<vmem>>) attributes {dimension_semantics = [#tpu.dimension_semantics<parallel>, #tpu.dimension_semantics<parallel>], iteration_bounds = array<i64: 2, 1>, scalar_prefetch = 0 : i64, scratch_operands = 0 : i64, tpu.core_type = #tpu.core_type<tc>, window_params = [{transform_indices = @transform_0, window_bounds = array<i64: 1, 64, 256>}, {pipeline_mode = #tpu.pipeline_mode<synchronous>, transform_indices = @transform_1, window_bounds = array<i64: 64, 1>}, {pipeline_mode = #tpu.pipeline_mode<synchronous>, transform_indices = @transform_2, window_bounds = array<i64: 64, 1>}, {transform_indices = @transform_3, window_bounds = array<i64: 1, 64, 256>}]} {
    %c0 = arith.constant 0 : index
    %c0_0 = arith.constant 0 : index
    %c0_1 = arith.constant 0 : index
    %0 = vector.load %arg2[%c0, %c0_0, %c0_1] : memref<1x64x256xf32, #tpu.memory_space<vmem>>, vector<1x64x256xf32>
    %cst = arith.constant dense<0.000000e+00> : vector<1x256xf32>
    %1 = vector.multi_reduction <add>, %0, %cst [1] : vector<1x64x256xf32> to vector<1x256xf32>
    %2 = vector.shape_cast %1 : vector<1x256xf32> to vector<1x1x256xf32>
    %cst_2 = arith.constant 6.400000e+01 : f32
    %3 = vector.broadcast %cst_2 : f32 to vector<1x1x256xf32>
    %4 = arith.divf %2, %3 : vector<1x1x256xf32>
    %5 = vector.broadcast %4 : vector<1x1x256xf32> to vector<1x64x256xf32>
    %6 = arith.subf %0, %5 : vector<1x64x256xf32>
    %7 = arith.mulf %6, %6 : vector<1x64x256xf32>
    %cst_3 = arith.constant dense<0.000000e+00> : vector<1x256xf32>
    %8 = vector.multi_reduction <add>, %7, %cst_3 [1] : vector<1x64x256xf32> to vector<1x256xf32>
    %9 = vector.shape_cast %8 : vector<1x256xf32> to vector<1x1x256xf32>
    %cst_4 = arith.constant 6.400000e+01 : f32
    %10 = vector.broadcast %cst_4 : f32 to vector<1x1x256xf32>
    %11 = arith.divf %9, %10 : vector<1x1x256xf32>
    %cst_5 = arith.constant 9.99999997E-7 : f32
    %12 = vector.broadcast %cst_5 : f32 to vector<1x1x256xf32>
    %13 = arith.addf %11, %12 : vector<1x1x256xf32>
    %14 = math.rsqrt %13 : vector<1x1x256xf32>
    %15 = vector.broadcast %14 : vector<1x1x256xf32> to vector<1x64x256xf32>
    %16 = arith.mulf %6, %15 : vector<1x64x256xf32>
    %c0_6 = arith.constant 0 : index
    %c0_7 = arith.constant 0 : index
    %17 = vector.load %arg3[%c0_6, %c0_7] : memref<64x1xf32, #tpu.memory_space<vmem>>, vector<64x1xf32>
    %18 = vector.shape_cast %17 : vector<64x1xf32> to vector<1x64x1xf32>
    %c0_8 = arith.constant 0 : index
    %c0_9 = arith.constant 0 : index
    %19 = vector.load %arg4[%c0_8, %c0_9] : memref<64x1xf32, #tpu.memory_space<vmem>>, vector<64x1xf32>
    %20 = vector.shape_cast %19 : vector<64x1xf32> to vector<1x64x1xf32>
    %21 = vector.broadcast %18 : vector<1x64x1xf32> to vector<1x64x256xf32>
    %22 = arith.mulf %21, %16 : vector<1x64x256xf32>
    %23 = vector.broadcast %20 : vector<1x64x1xf32> to vector<1x64x256xf32>
    %24 = arith.addf %22, %23 : vector<1x64x256xf32>
    %c0_10 = arith.constant 0 : index
    %c0_11 = arith.constant 0 : index
    %c0_12 = arith.constant 0 : index
    %25 = vector.load %arg5[%c0_10, %c0_11, %c0_12] : memref<1x64x256xf32, #tpu.memory_space<vmem>>, vector<1x64x256xf32>
    tpu.vector_store %arg5[%c0_10, %c0_11, %c0_12], %24 {strides = array<i32>} : memref<1x64x256xf32, #tpu.memory_space<vmem>>, vector<1x64x256xf32>,
    return
  }
  func.func @transform_0(%arg0: i32, %arg1: i32) -> (i32, i32, i32) {
    %c0_i32 = arith.constant 0 : i32
    %c0_i32_0 = arith.constant 0 : i32
    return %arg0, %c0_i32, %arg1 : i32, i32, i32
  }
  func.func @transform_1(%arg0: i32, %arg1: i32) -> (i32, i32) {
    %c0_i32 = arith.constant 0 : i32
    %c0_i32_0 = arith.constant 0 : i32
    %c0_i32_1 = arith.constant 0 : i32
    return %c0_i32, %c0_i32_0 : i32, i32
  }
  func.func @transform_2(%arg0: i32, %arg1: i32) -> (i32, i32) {
    %c0_i32 = arith.constant 0 : i32
    %c0_i32_0 = arith.constant 0 : i32
    %c0_i32_1 = arith.constant 0 : i32
    return %c0_i32, %c0_i32_0 : i32, i32
  }
  func.func @transform_3(%arg0: i32, %arg1: i32) -> (i32, i32, i32) {
    %c0_i32 = arith.constant 0 : i32
    %c0_i32_0 = arith.constant 0 : i32
    return %arg0, %c0_i32, %arg1 : i32, i32, i32
  }
}

</mosaic_0001>

<llo_original>
// kernel: tpu_custom_call.1
$region0: #{tpu_custom_call.1}
  #allocation0 [shape = 'u32[]', space=smem, size = 0x4, offset = 0x4, fixed_abs, tag = 'smem constant byte address 0x4 - core index']
  #allocation1 [shape = 'u32[144,128]{1,0:T(1,128)}', space=vmem, size = 0x12000, scoped, tag = 'internal scratch']
  %s0 = inlined_call_operand.hbm [shape: f32[2,64,256], index: 0, kind: input, shape index: {}]
  %s1 = inlined_call_operand.vmem [shape: f32[64,1], index: 1, kind: input, shape index: {}]
  %s2 = inlined_call_operand.vmem [shape: f32[64,1], index: 2, kind: input, shape index: {}]
  %s3 = inlined_call_operand.hbm [shape: f32[2,64,256], index: 3, kind: output, shape index: {}]
  %s4 = sld [smem:[#allocation0]]
  $region49: #{tpu_custom_call.1} parent=0
    _
  %s6 = ssub.s32 1, %s4
  %s7 = scalar_select 0, %s6, %s4
  $region1: #{tpu_custom_call.1} parent=0
    #allocation2 [shape = 'u8[131072]{0}', space=vmem, size = 0x20000, scoped, tag = 'input window, operand 0']
    #allocation3 [shape = 's32[2]{0}', space=sflag, size = 0x8, scoped, tag = 'scoped memory for tpu_custom_call.1']
    #allocation4 [shape = 's32[2]{0}', space=sflag, size = 0x8, scoped, tag = 'scoped memory for tpu_custom_call.1']
    #allocation5 [shape = 'u8[131072]{0}', space=vmem, size = 0x20000, scoped, tag = 'output window, operand 0']
    %8 = vsyncpa [#allocation3], 0
    %s9 = scalar_lea.sflag [#allocation3], 1
    %10 = vsyncpa %s9, 0
    %11 = vsyncpa [#allocation4], 0
    %s12 = scalar_lea.sflag [#allocation4], 1
    %13 = vsyncpa %s12, 0
    loop: start=0, step=1, limit=4
    $region2: #{tpu_custom_call.1} parent=1 // loop_pre_header
      _
    $region3: #{tpu_custom_call.1} parent=1 // loop_header
      %s15 = sphi 0, %s19
      %p16 = scmp.ge.s32.totalorder %s15, 4
      %s22 = sphi 0, %s34
      %s23 = sphi 0, %s30
      %s24 = sphi 0, %s22
      %s25 = sphi 0, %s23
      %s26 = sphi 0, %s24
      %s27 = sphi 0, %s25
      %s39 = sphi 0, %s41
      %s42 = sphi 0, %s39
      %s43 = sphi 0, %s42
      %s59 = sphi 0, %s43
      %s63 = sphi 0, %s63
      %s65 = sphi 0, %s63
      %s66 = sphi 0, %s65
      %s80 = sphi 0, %s66
      %s84 = sphi 0, %s84
      %s86 = sphi 0, %s84
      %s87 = sphi 0, %s86
      %s101 = sphi 0, %s87
      %s109 = sphi 0, %s111
      %s112 = sphi 0, %s109
      %s113 = sphi 0, %s112
      %s129 = sphi 0, %s113
    $region4: #{tpu_custom_call.1} parent=1 // loop_header_branch
      %18 = sbr.rel (%p16) target = $region8
    $region5: #{tpu_custom_call.1} parent=1 // loop_body
      %s20 = ssub.s32 %s15, 1
      %s21 = ssub.s32 %s15, 2
      %s28 = sadd.s32 1, %s23
      %p29 = scmp.ge.s32.totalorder %s28, 1
      %s30 = scalar_select %p29, 0, %s28
      %s31 = sadd.s32 1, %s22
      %s32 = scalar_select %p29, %s31, %s22
      %p33 = scmp.ge.s32.totalorder %s32, 2
      %s34 = scalar_select %p33, 0, %s32
      %s35 = ssub.s32 %s22, %s34
      %s36 = ssub.s32 %s23, %s30
      %s37 = sor.u32 %s35, %s36
      %p38 = scmp.eq.s32.totalorder %s37, 0
      %s40 = sadd.s32 %s39, 1
      %s41 = scalar_select %p38, %s39, %s40
      %p44 = pneg %p38
      %p45 = scmp.eq.s32.totalorder %s15, 1
      %p46 = por %p44, %p45
      %p47 = scmp.ne.s32.totalorder %s39, %s42
      %p48 = scmp.eq.s32.totalorder %s15, 0
      %p49 = por %p47, %p48
      %p50 = scmp.ne.s32.totalorder %s39, %s42
      %p51 = scmp.eq.s32.totalorder %s20, 1
      %p52 = por %p50, %p51
      %p53 = scmp.ne.s32.totalorder %s42, %s43
      %p54 = scmp.eq.s32.totalorder %s20, 0
      %p55 = por %p53, %p54
      %p56 = scmp.ne.s32.totalorder %s42, %s43
      %p57 = scmp.eq.s32.totalorder %s21, 1
      %p58 = por %p56, %p57
      %p60 = scmp.ne.s32.totalorder %s43, %s59
      %p61 = scmp.eq.s32.totalorder %s21, 0
      %p62 = por %p60, %p61
      %s64 = sadd.s32 %s63, 1
      %p67 = scmp.eq.s32.totalorder %s15, 1
      %p68 = scmp.ne.s32.totalorder %s63, %s65
      %p69 = scmp.eq.s32.totalorder %s15, 0
      %p70 = por %p68, %p69
      %p71 = scmp.ne.s32.totalorder %s63, %s65
      %p72 = scmp.eq.s32.totalorder %s20, 1
      %p73 = por %p71, %p72
      %p74 = scmp.ne.s32.totalorder %s65, %s66
      %p75 = scmp.eq.s32.totalorder %s20, 0
      %p76 = por %p74, %p75
      %p77 = scmp.ne.s32.totalorder %s65, %s66
      %p78 = scmp.eq.s32.totalorder %s21, 1
      %p79 = por %p77, %p78
      %p81 = scmp.ne.s32.totalorder %s66, %s80
      %p82 = scmp.eq.s32.totalorder %s21, 0
      %p83 = por %p81, %p82
      %s85 = sadd.s32 %s84, 1
      %p88 = scmp.eq.s32.totalorder %s15, 1
      %p89 = scmp.ne.s32.totalorder %s84, %s86
      %p90 = scmp.eq.s32.totalorder %s15, 0
      %p91 = por %p89, %p90
      %p92 = scmp.ne.s32.totalorder %s84, %s86
      %p93 = scmp.eq.s32.totalorder %s20, 1
      %p94 = por %p92, %p93
      %p95 = scmp.ne.s32.totalorder %s86, %s87
      %p96 = scmp.eq.s32.totalorder %s20, 0
      %p97 = por %p95, %p96
      %p98 = scmp.ne.s32.totalorder %s86, %s87
      %p99 = scmp.eq.s32.totalorder %s21, 1
      %p100 = por %p98, %p99
      %p102 = scmp.ne.s32.totalorder %s87, %s101
      %p103 = scmp.eq.s32.totalorder %s21, 0
      %p104 = por %p102, %p103
      %s105 = ssub.s32 %s22, %s34
      %s106 = ssub.s32 %s23, %s30
      %s107 = sor.u32 %s105, %s106
      %p108 = scmp.eq.s32.totalorder %s107, 0
      %s110 = sadd.s32 %s109, 1
      %s111 = scalar_select %p108, %s109, %s110
      %p114 = pneg %p108
      %p115 = scmp.eq.s32.totalorder %s15, 1
      %p116 = por %p114, %p115
      %p117 = scmp.ne.s32.totalorder %s109, %s112
      %p118 = scmp.eq.s32.totalorder %s15, 0
      %p119 = por %p117, %p118
      %p120 = scmp.ne.s32.totalorder %s109, %s112
      %p121 = scmp.eq.s32.totalorder %s20, 1
      %p122 = por %p120, %p121
      %p123 = scmp.ne.s32.totalorder %s112, %s113
      %p124 = scmp.eq.s32.totalorder %s20, 0
      %p125 = por %p123, %p124
      %p126 = scmp.ne.s32.totalorder %s112, %s113
      %p127 = scmp.eq.s32.totalorder %s21, 1
      %p128 = por %p126, %p127
      %p130 = scmp.ne.s32.totalorder %s113, %s129
      %p131 = scmp.eq.s32.totalorder %s21, 0
      %p132 = por %p130, %p131
      %p133 = scmp.le.s32.totalorder 1, %s15
      %p134 = scmp.lt.s32.totalorder %s15, 3
      %p135 = pnand %p133, %p134
      %p136 = pneg %p135
      // Predicated region
      $region9: #{tpu_custom_call.1} parent=5 // pred_check
        _
      $region10: #{tpu_custom_call.1} parent=5 // pred_check_branch
        %138 = sbr.rel (%p135) target = $region12
      $region11: #{tpu_custom_call.1} parent=5 // pred_region
        %s139 = ssub.s32 %s15, 1
        // Predicated region
        $region13: #{tpu_custom_call.1} parent=11 // pred_check
          %p140 = pneg %p76
        $region14: #{tpu_custom_call.1} parent=11 // pred_check_branch
          %142 = sbr.rel (%p140) target = $region16
        $region15: #{tpu_custom_call.1} parent=11 // pred_region
          _
        $region16: #{tpu_custom_call.1} parent=11 // pred_fallthru
          _
        // Predicated region
        $region17: #{tpu_custom_call.1} parent=11 // pred_check
          %p143 = pneg %p97
        $region18: #{tpu_custom_call.1} parent=11 // pred_check_branch
          %145 = sbr.rel (%p143) target = $region20
        $region19: #{tpu_custom_call.1} parent=11 // pred_region
          _
        $region20: #{tpu_custom_call.1} parent=11 // pred_fallthru
          _
      $region12: #{tpu_custom_call.1} parent=5 // pred_fallthru
        _
      %p146 = scmp.lt.s32.totalorder %s15, 2
      // Predicated region
      $region21: #{tpu_custom_call.1} parent=5 // pred_check
        %p147 = pneg %p146
      $region22: #{tpu_custom_call.1} parent=5 // pred_check_branch
        %149 = sbr.rel (%p147) target = $region24
      $region23: #{tpu_custom_call.1} parent=5 // pred_region
        // Predicated region
        $region25: #{tpu_custom_call.1} parent=23 // pred_check
          %p150 = pneg %p49
        $region26: #{tpu_custom_call.1} parent=23 // pred_check_branch
          %152 = sbr.rel (%p150) target = $region28
        $region27: #{tpu_custom_call.1} parent=23 // pred_region
          %s153 = sand.u32 %s39, 1
          %s154 = scalar_lea.sflag [#allocation3], %s153
          %s155 = sand.u32 %s39, 1
          %s156 = smul.addr %s155, 128
          %s157 = scalar_lea.vmem [#allocation2], %s156
          %s158 = smul.u32 2, %s23
          %s160 = ssub.s32 2048, 2048
          %161 = vsyncadd %s154, %s160
          %s162 = smul.addr %s22, 16
          %s163 = sadd.s32 %s158, %s162
          %s164 = smul.addr %s163, 128
          %s165 = scalar_lea.hbm %s0, %s164
          %s166 = sshll.u32 %s157, 4
          %s167 = int_to_ptr.vmem [resolvable:$true] %s166
          %172 = dma.hbm_to_vmem [thread:$0]  %s165, 2048, %s167, %s154, 256, 256, 16
        $region28: #{tpu_custom_call.1} parent=23 // pred_fallthru
          _
      $region24: #{tpu_custom_call.1} parent=5 // pred_fallthru
        _
      %p173 = scmp.le.s32.totalorder 1, %s15
      %p174 = scmp.lt.s32.totalorder %s15, 3
      %p175 = pnand %p173, %p174
      %p176 = pneg %p175
      // Predicated region
      $region29: #{tpu_custom_call.1} parent=5 // pred_check
        _
      $region30: #{tpu_custom_call.1} parent=5 // pred_check_branch
        %178 = sbr.rel (%p175) target = $region32
      $region31: #{tpu_custom_call.1} parent=5 // pred_region
        %s179 = ssub.s32 %s15, 1
        %s180 = sand.u32 %s42, 1
        %s181 = scalar_lea.sflag [#allocation3], %s180
        %s182 = sand.u32 %s42, 1
        %s183 = smul.addr %s182, 128
        %s184 = scalar_lea.vmem [#allocation2], %s183
        // Predicated region
        $region33: #{tpu_custom_call.1} parent=31 // pred_check
          %p185 = pneg %p55
        $region34: #{tpu_custom_call.1} parent=31 // pred_check_branch
          %187 = sbr.rel (%p185) target = $region36
        $region35: #{tpu_custom_call.1} parent=31 // pred_region
          %188 = dma.done %s181, 2048
        $region36: #{tpu_custom_call.1} parent=31 // pred_fallthru
          _
        %s189 = sand.u32 %s42, 1
        %s190 = scalar_lea.sflag [#allocation3], %s189
        %s191 = sand.u32 %s42, 1
        %s192 = smul.addr %s191, 128
        %s193 = scalar_lea.vmem [#allocation2], %s192
        %p194 = pneg %p55
        %p195 = pneg %p52
        %p196 = pneg %p76
        %p197 = pneg %p73
        %p198 = pneg %p97
        %p199 = pneg %p94
        %p200 = pneg %p125
        %p201 = pneg %p122
        %s202 = sand.u32 %s112, 1
        %s203 = scalar_lea.sflag [#allocation4], %s202
        %s204 = sand.u32 %s112, 1
        %s205 = smul.addr %s204, 128
        %s206 = scalar_lea.vmem [#allocation5], %s205
        %s207 = smul.u32 2, %s25
        %s208 = smul.u32 2, %s25
        %v209 = vld [vmem:[%s184] sm:$0xff]
        %v210 = vld [vmem:[%s184 + $0x8] sm:$0xff]
        %v211 = vld [vmem:[%s184 + $0x10] sm:$0xff]
        %v212 = vld [vmem:[%s184 + $0x18] sm:$0xff]
        %v213 = vld [vmem:[%s184 + $0x20] sm:$0xff]
        %v214 = vld [vmem:[%s184 + $0x28] sm:$0xff]
        %v215 = vld [vmem:[%s184 + $0x30] sm:$0xff]
        %v216 = vld [vmem:[%s184 + $0x38] sm:$0xff]
        %v217 = vld [vmem:[%s184 + $0x40] sm:$0xff]
        %v218 = vld [vmem:[%s184 + $0x48] sm:$0xff]
        %v219 = vld [vmem:[%s184 + $0x50] sm:$0xff]
        %v220 = vld [vmem:[%s184 + $0x58] sm:$0xff]
        %v221 = vld [vmem:[%s184 + $0x60] sm:$0xff]
        %v222 = vld [vmem:[%s184 + $0x68] sm:$0xff]
        %v223 = vld [vmem:[%s184 + $0x70] sm:$0xff]
        %v224 = vld [vmem:[%s184 + $0x78] sm:$0xff]
        %v225 = vadd.f32 %v209, %v211
        %v226 = vadd.f32 %v225, %v213
        %v227 = vadd.f32 %v226, %v215
        %v228 = vadd.f32 %v227, %v217
        %v229 = vadd.f32 %v228, %v219
        %v230 = vadd.f32 %v229, %v221
        %v231 = vadd.f32 %v230, %v223
        %v232 = vrot.slane %v231, 4
        %v233 = vadd.f32 %v231, %v232
        %v234 = vrot.slane %v233, 2
        %v235 = vadd.f32 %v233, %v234
        %v236 = vrot.slane %v235, 1
        %v237 = vadd.f32 %v235, %v236
        %v238 = vadd.f32 %v210, %v212
        %v239 = vadd.f32 %v238, %v214
        %v240 = vadd.f32 %v239, %v216
        %v241 = vadd.f32 %v240, %v218
        %v242 = vadd.f32 %v241, %v220
        %v243 = vadd.f32 %v242, %v222
        %v244 = vadd.f32 %v243, %v224
        %v245 = vrot.slane %v244, 4
        %v246 = vadd.f32 %v244, %v245
        %v247 = vrot.slane %v246, 2
        %v248 = vadd.f32 %v246, %v247
        %v249 = vrot.slane %v248, 1
        %v250 = vadd.f32 %v248, %v249
        %v251 = vrcp.pop 64.0
        %v252 = vmul.f32 %v237, %v251
        %v253 = vmul.f32 %v250, %v251
        %v254 = vsub.f32 %v209, %v252
        %v255 = vsub.f32 %v210, %v253
        %v256 = vsub.f32 %v211, %v252
        %v257 = vsub.f32 %v212, %v253
        %v258 = vsub.f32 %v213, %v252
        %v259 = vsub.f32 %v214, %v253
        %v260 = vsub.f32 %v215, %v252
        %v261 = vsub.f32 %v216, %v253
        %v262 = vsub.f32 %v217, %v252
        %v263 = vsub.f32 %v218, %v253
        %v264 = vsub.f32 %v219, %v252
        %v265 = vsub.f32 %v220, %v253
        %v266 = vsub.f32 %v221, %v252
        %v267 = vsub.f32 %v222, %v253
        %v268 = vsub.f32 %v223, %v252
        %v269 = vsub.f32 %v224, %v253
        %v270 = vmul.f32 %v254, %v254
        %v271 = vmul.f32 %v255, %v255
        %v272 = vmul.f32 %v256, %v256
        %v273 = vmul.f32 %v257, %v257
        %v274 = vmul.f32 %v258, %v258
        %v275 = vmul.f32 %v259, %v259
        %v276 = vmul.f32 %v260, %v260
        %v277 = vmul.f32 %v261, %v261
        %v278 = vmul.f32 %v262, %v262
        %v279 = vmul.f32 %v263, %v263
        %v280 = vmul.f32 %v264, %v264
        %v281 = vmul.f32 %v265, %v265
        %v282 = vmul.f32 %v266, %v266
        %v283 = vmul.f32 %v267, %v267
        %v284 = vmul.f32 %v268, %v268
        %v285 = vmul.f32 %v269, %v269
        %v286 = vadd.f32 %v270, %v272
        %v287 = vadd.f32 %v286, %v274
        %v288 = vadd.f32 %v287, %v276
        %v289 = vadd.f32 %v288, %v278
        %v290 = vadd.f32 %v289, %v280
        %v291 = vadd.f32 %v290, %v282
        %v292 = vadd.f32 %v291, %v284
        %v293 = vrot.slane %v292, 4
        %v294 = vadd.f32 %v292, %v293
        %v295 = vrot.slane %v294, 2
        %v296 = vadd.f32 %v294, %v295
        %v297 = vrot.slane %v296, 1
        %v298 = vadd.f32 %v296, %v297
        %v299 = vadd.f32 %v271, %v273
        %v300 = vadd.f32 %v299, %v275
        %v301 = vadd.f32 %v300, %v277
        %v302 = vadd.f32 %v301, %v279
        %v303 = vadd.f32 %v302, %v281
        %v304 = vadd.f32 %v303, %v283
        %v305 = vadd.f32 %v304, %v285
        %v306 = vrot.slane %v305, 4
        %v307 = vadd.f32 %v305, %v306
        %v308 = vrot.slane %v307, 2
        %v309 = vadd.f32 %v307, %v308
        %v310 = vrot.slane %v309, 1
        %v311 = vadd.f32 %v309, %v310
        %v312 = vmul.f32 %v298, %v251
        %v313 = vmul.f32 %v311, %v251
        %v314 = vadd.f32 %v312, 1e-06
        %v315 = vadd.f32 %v313, 1e-06
        %v316 = vrsqrt.pop %v314
        %v317 = vrsqrt.pop %v315
        %v318 = vmul.f32 %v254, %v316
        %v319 = vmul.f32 %v255, %v317
        %v320 = vmul.f32 %v256, %v316
        %v321 = vmul.f32 %v257, %v317
        %v322 = vmul.f32 %v258, %v316
        %v323 = vmul.f32 %v259, %v317
        %v324 = vmul.f32 %v260, %v316
        %v325 = vmul.f32 %v261, %v317
        %v326 = vmul.f32 %v262, %v316
        %v327 = vmul.f32 %v263, %v317
        %v328 = vmul.f32 %v264, %v316
        %v329 = vmul.f32 %v265, %v317
        %v330 = vmul.f32 %v266, %v316
        %v331 = vmul.f32 %v267, %v317
        %v332 = vmul.f32 %v268, %v316
        %v333 = vmul.f32 %v269, %v317
        %v334 = vld [vmem:[%s1] sm:$0xff]
        %v335 = vld [vmem:[%s1 + $0x8] sm:$0xff]
        %v336 = vld [vmem:[%s1 + $0x10] sm:$0xff]
        %v337 = vld [vmem:[%s1 + $0x18] sm:$0xff]
        %v338 = vld [vmem:[%s1 + $0x20] sm:$0xff]
        %v339 = vld [vmem:[%s1 + $0x28] sm:$0xff]
        %v340 = vld [vmem:[%s1 + $0x30] sm:$0xff]
        %v341 = vld [vmem:[%s1 + $0x38] sm:$0xff]
        %v342 = vld [vmem:[%s2] sm:$0xff]
        %v343 = vld [vmem:[%s2 + $0x8] sm:$0xff]
        %v344 = vld [vmem:[%s2 + $0x10] sm:$0xff]
        %v345 = vld [vmem:[%s2 + $0x18] sm:$0xff]
        %v346 = vld [vmem:[%s2 + $0x20] sm:$0xff]
        %v347 = vld [vmem:[%s2 + $0x28] sm:$0xff]
        %v348 = vld [vmem:[%s2 + $0x30] sm:$0xff]
        %v349 = vld [vmem:[%s2 + $0x38] sm:$0xff]
        %351 = vset.pattern.permute.xlu0 0
        %352 = vperm.xlu0 %351, %v334
        %v353 = vpop.permute.xlu0 %352
        %356 = vset.pattern.permute.xlu0 0
        %357 = vperm.xlu0 %356, %v335
        %v358 = vpop.permute.xlu0 %357
        %361 = vset.pattern.permute.xlu0 0
        %362 = vperm.xlu0 %361, %v336
        %v363 = vpop.permute.xlu0 %362
        %366 = vset.pattern.permute.xlu0 0
        %367 = vperm.xlu0 %366, %v337
        %v368 = vpop.permute.xlu0 %367
        %371 = vset.pattern.permute.xlu0 0
        %372 = vperm.xlu0 %371, %v338
        %v373 = vpop.permute.xlu0 %372
        %376 = vset.pattern.permute.xlu0 0
        %377 = vperm.xlu0 %376, %v339
        %v378 = vpop.permute.xlu0 %377
        %381 = vset.pattern.permute.xlu0 0
        %382 = vperm.xlu0 %381, %v340
        %v383 = vpop.permute.xlu0 %382
        %386 = vset.pattern.permute.xlu0 0
        %387 = vperm.xlu0 %386, %v341
        %v388 = vpop.permute.xlu0 %387
        %v390 = vmul.f32 %v353, %v318
        %v391 = vmul.f32 %v353, %v319
        %v392 = vmul.f32 %v358, %v320
        %v393 = vmul.f32 %v358, %v321
        %v394 = vmul.f32 %v363, %v322
        %v395 = vmul.f32 %v363, %v323
        %v396 = vmul.f32 %v368, %v324
        %v397 = vmul.f32 %v368, %v325
        %v398 = vmul.f32 %v373, %v326
        %v399 = vmul.f32 %v373, %v327
        %v400 = vmul.f32 %v378, %v328
        %v401 = vmul.f32 %v378, %v329
        %v402 = vmul.f32 %v383, %v330
        %v403 = vmul.f32 %v383, %v331
        %v404 = vmul.f32 %v388, %v332
        %v405 = vmul.f32 %v388, %v333
        %407 = vset.pattern.permute.xlu0 0
        %408 = vperm.xlu0 %407, %v342
        %v409 = vpop.permute.xlu0 %408
        %412 = vset.pattern.permute.xlu0 0
        %413 = vperm.xlu0 %412, %v343
        %v414 = vpop.permute.xlu0 %413
        %417 = vset.pattern.permute.xlu0 0
        %418 = vperm.xlu0 %417, %v344
        %v419 = vpop.permute.xlu0 %418
        %422 = vset.pattern.permute.xlu0 0
        %423 = vperm.xlu0 %422, %v345
        %v424 = vpop.permute.xlu0 %423
        %427 = vset.pattern.permute.xlu0 0
        %428 = vperm.xlu0 %427, %v346
        %v429 = vpop.permute.xlu0 %428
        %432 = vset.pattern.permute.xlu0 0
        %433 = vperm.xlu0 %432, %v347
        %v434 = vpop.permute.xlu0 %433
        %437 = vset.pattern.permute.xlu0 0
        %438 = vperm.xlu0 %437, %v348
        %v439 = vpop.permute.xlu0 %438
        %442 = vset.pattern.permute.xlu0 0
        %443 = vperm.xlu0 %442, %v349
        %v444 = vpop.permute.xlu0 %443
        %v446 = vadd.f32 %v390, %v409
        %v447 = vadd.f32 %v391, %v409
        %v448 = vadd.f32 %v392, %v414
        %v449 = vadd.f32 %v393, %v414
        %v450 = vadd.f32 %v394, %v419
        %v451 = vadd.f32 %v395, %v419
        %v452 = vadd.f32 %v396, %v424
        %v453 = vadd.f32 %v397, %v424
        %v454 = vadd.f32 %v398, %v429
        %v455 = vadd.f32 %v399, %v429
        %v456 = vadd.f32 %v400, %v434
        %v457 = vadd.f32 %v401, %v434
        %v458 = vadd.f32 %v402, %v439
        %v459 = vadd.f32 %v403, %v439
        %v460 = vadd.f32 %v404, %v444
        %v461 = vadd.f32 %v405, %v444
        %462 = vst [vmem:[%s206] sm:$0xff] %v446
        %463 = vst [vmem:[%s206 + $0x8] sm:$0xff] %v447
        %464 = vst [vmem:[%s206 + $0x10] sm:$0xff] %v448
        %465 = vst [vmem:[%s206 + $0x18] sm:$0xff] %v449
        %466 = vst [vmem:[%s206 + $0x20] sm:$0xff] %v450
        %467 = vst [vmem:[%s206 + $0x28] sm:$0xff] %v451
        %468 = vst [vmem:[%s206 + $0x30] sm:$0xff] %v452
        %469 = vst [vmem:[%s206 + $0x38] sm:$0xff] %v453
        %470 = vst [vmem:[%s206 + $0x40] sm:$0xff] %v454
        %471 = vst [vmem:[%s206 + $0x48] sm:$0xff] %v455
        %472 = vst [vmem:[%s206 + $0x50] sm:$0xff] %v456
        %473 = vst [vmem:[%s206 + $0x58] sm:$0xff] %v457
        %474 = vst [vmem:[%s206 + $0x60] sm:$0xff] %v458
        %475 = vst [vmem:[%s206 + $0x68] sm:$0xff] %v459
        %476 = vst [vmem:[%s206 + $0x70] sm:$0xff] %v460
        %477 = vst [vmem:[%s206 + $0x78] sm:$0xff] %v461
        %s478 = sand.u32 %s112, 1
        %s479 = scalar_lea.sflag [#allocation4], %s478
        %s480 = sand.u32 %s112, 1
        %s481 = smul.addr %s480, 128
        %s482 = scalar_lea.vmem [#allocation5], %s481
        // Predicated region
        $region37: #{tpu_custom_call.1} parent=31 // pred_check
          %p483 = pneg %p122
        $region38: #{tpu_custom_call.1} parent=31 // pred_check_branch
          %485 = sbr.rel (%p483) target = $region40
        $region39: #{tpu_custom_call.1} parent=31 // pred_region
          %s486 = smul.u32 2, %s25
          %s488 = ssub.s32 2048, 2048
          %489 = vsyncadd %s479, %s488
          %s490 = smul.addr %s24, 16
          %s491 = sadd.s32 %s486, %s490
          %s492 = smul.addr %s491, 128
          %s493 = scalar_lea.hbm %s3, %s492
          %s494 = sshll.u32 %s482, 4
          %s495 = int_to_ptr.vmem [resolvable:$true] %s494
          %500 = dma.vmem_to_hbm [thread:$0]  %s495, 2048, %s493, %s479, 256, 256, 16
        $region40: #{tpu_custom_call.1} parent=31 // pred_fallthru
          _
      $region32: #{tpu_custom_call.1} parent=5 // pred_fallthru
        _
      %p501 = scmp.le.s32.totalorder 2, %s15
      // Predicated region
      $region41: #{tpu_custom_call.1} parent=5 // pred_check
        %p502 = pneg %p501
      $region42: #{tpu_custom_call.1} parent=5 // pred_check_branch
        %504 = sbr.rel (%p502) target = $region44
      $region43: #{tpu_custom_call.1} parent=5 // pred_region
        %s505 = ssub.s32 %s15, 2
        // Predicated region
        $region45: #{tpu_custom_call.1} parent=43 // pred_check
          %p506 = pneg %p128
        $region46: #{tpu_custom_call.1} parent=43 // pred_check_branch
          %508 = sbr.rel (%p506) target = $region48
        $region47: #{tpu_custom_call.1} parent=43 // pred_region
          %s509 = sand.u32 %s113, 1
          %s510 = scalar_lea.sflag [#allocation4], %s509
          %s511 = sand.u32 %s113, 1
          %s512 = smul.addr %s511, 128
          %s513 = scalar_lea.vmem [#allocation5], %s512
          %514 = dma.done %s510, 2048
        $region48: #{tpu_custom_call.1} parent=43 // pred_fallthru
          _
      $region44: #{tpu_custom_call.1} parent=5 // pred_fallthru
        _
    $region6: #{tpu_custom_call.1} parent=1 // loop_footer
      %s19 = sadd.s32 1, %s15
    $region7: #{tpu_custom_call.1} parent=1 // loop_footer_branch
      %14 = sbr.rel target = $region3
    $region8: #{tpu_custom_call.1} parent=1 // loop_exit
      _
    %515 = vsyncpa [#allocation3], 1
    %s516 = scalar_lea.sflag [#allocation3], 1
    %517 = vsyncpa %s516, 1
    %518 = vsyncpa [#allocation4], 1
    %s519 = scalar_lea.sflag [#allocation4], 1
    %520 = vsyncpa %s519, 1

</llo_original>
